<compile_context>
chip_gen: v6e
topology: v6e:2x2x1
jax: 0.10.0
libtpu: 0.0.40
codegen_flags: <defaults>
</compile_context>

<pallas_src>
import functools
import math

import jax
import jax.numpy as jnp
from jax import lax
from jax.experimental import pallas as pl
from jax.experimental.pallas import tpu as pltpu


# ----------------------------- Pallas kernel --------------------------------
def _conv1d_taps_kernel(x_ref, w_ref, b_ref, o_ref, *, kernel_size, dilation,
                        t_out):
    """One batch element: o[0] = sum_k W[k] @ x[0, :, k*d : k*d + t_out] + b.

    x_ref: (1, C_in, T_pad)   compute dtype (bf16 by default)
    w_ref: (K, C_out, C_in)   compute dtype, VMEM-resident
    b_ref: (C_out, 1)         f32, VMEM-resident
    o_ref: (1, C_out, t_out)  f32, written once (NCT, time on lanes)
    """
    c_out = o_ref.shape[1]
    acc = jnp.zeros((c_out, t_out), jnp.float32)
    for k in range(kernel_size):                       # static unroll; K is small
        start = k * dilation                           # static element offset
        xk = x_ref[0, :, start:start + t_out]          # (C_in, t_out)
        acc = acc + jnp.dot(w_ref[k], xk, preferred_element_type=jnp.float32)
    o_ref[0] = (acc + b_ref[...]).astype(o_ref.dtype)  # bias (C_out,1) broadcast


def conv1d_nct(x, w_taps, bias_col, *, dilation=1, padding=0):
    """x: (B, C_in, T) NCT; w_taps: (K, C_out, C_in); bias_col: (C_out, 1) f32.

    Returns (B, C_out, T_out) f32 with T_out = T + 2*padding - dilation*(K-1).
    """
    B, C_in, T = x.shape
    K, C_out, C_in_w = w_taps.shape
    assert C_in_w == C_in, (C_in_w, C_in)
    t_out = T + 2 * padding - dilation * (K - 1)
    assert t_out >= 1, "input too short for this kernel_size/dilation/padding"

    # Single fused XLA op: halo-pad along time + cast to the compute dtype.
    xp = x
    if padding:
        xp = jnp.pad(x, ((0, 0), (0, 0), (padding, padding)))
    xp = xp.astype(w_taps.dtype)
    t_pad = T + 2 * padding

    kernel = functools.partial(_conv1d_taps_kernel, kernel_size=K,
                               dilation=dilation, t_out=t_out)
    return pl.pallas_call(
        kernel,
        out_shape=jax.ShapeDtypeStruct((B, C_out, t_out), jnp.float32),
        grid=(B,),
        in_specs=[
            pl.BlockSpec((1, C_in, t_pad), lambda b: (b, 0, 0)),   # streamed / batch
            pl.BlockSpec((K, C_out, C_in), lambda b: (0, 0, 0)),   # resident weights
            pl.BlockSpec((C_out, 1), lambda b: (0, 0)),            # resident bias
        ],
        out_specs=pl.BlockSpec((1, C_out, t_out), lambda b: (b, 0, 0)),
        compiler_params=pltpu.CompilerParams(
            dimension_semantics=("parallel",)),                    # megacore over B
    )(xp, w_taps, bias_col)


# ----------------------------- ConvNorm module -------------------------------
class ConvNorm:
    """JAX/Pallas equivalent of the PyTorch ConvNorm (Conv1d + Xavier init)."""

    def __init__(self, key, in_channels, out_channels, kernel_size=1, stride=1,
                 padding=None, dilation=1, bias=True, w_init_gain='linear',
                 compute_dtype=jnp.bfloat16):
        if padding is None:
            assert kernel_size % 2 == 1
            padding = int(dilation * (kernel_size - 1) / 2)
        assert stride == 1  # TODO(synk): stride > 1 not implemented (unused in STT)
        self.in_channels = in_channels
        self.out_channels = out_channels
        self.kernel_size = kernel_size
        self.padding = padding
        self.dilation = dilation
        self.compute_dtype = compute_dtype

        # torch.nn.init.xavier_uniform_(weight, gain=calculate_gain(w_init_gain))
        gain = {'linear': 1.0, 'sigmoid': 1.0, 'tanh': 5.0 / 3.0,
                'relu': math.sqrt(2.0)}.get(w_init_gain, 1.0)
        fan_in = in_channels * kernel_size
        fan_out = out_channels * kernel_size
        wkey, bkey = jax.random.split(key)
        wbound = gain * math.sqrt(6.0 / (fan_in + fan_out))
        w = jax.random.uniform(wkey, (out_channels, in_channels, kernel_size),
                               jnp.float32, -wbound, wbound)       # torch layout
        if bias:
            bbound = 1.0 / math.sqrt(fan_in)                       # Conv1d default
            b = jax.random.uniform(bkey, (out_channels,), jnp.float32,
                                   -bbound, bbound)
        else:
            b = jnp.zeros((out_channels,), jnp.float32)

        # One-time relayout/cast for the kernel: (C_out, C_in, K) -> (K, C_out, C_in),
        # stored in the compute dtype; bias kept in f32 (fused into the epilogue).
        self.w_taps = jnp.transpose(w, (2, 0, 1)).astype(compute_dtype)
        self.bias_col = b.reshape(out_channels, 1).astype(jnp.float32)
        # Torch-layout copies kept only for the reference check in __main__.
        self.w_torch = w
        self.b_torch = b

    def __call__(self, signal):
        """signal: (B, C_in, T) float32 (PyTorch NCT) -> (B, C_out, T_out) f32."""
        return conv1d_nct(signal, self.w_taps, self.bias_col,
                          dilation=self.dilation, padding=self.padding)


# ----------------------------------------------------------------------------
if __name__ == "__main__":
    def reference(conv, signal):
        # Same quantization as the kernel path (inputs/weights rounded to the
        # compute dtype, f32 accumulation), evaluated with XLA's conv.
        x_q = signal.astype(conv.compute_dtype).astype(jnp.float32)
        w_q = conv.w_torch.astype(conv.compute_dtype).astype(jnp.float32)
        out = lax.conv_general_dilated(
            x_q, w_q, window_strides=(1,),
            padding=[(conv.padding, conv.padding)],
            rhs_dilation=(conv.dilation,),
            dimension_numbers=("NCH", "OIH", "NCH"),
            precision=lax.Precision.HIGHEST)
        return out + conv.b_torch[None, :, None]

    key = jax.random.PRNGKey(0)
    cases = [
        # (B, C_in, C_out, K, dilation, T, w_init_gain, atol)
        (2, 80, 32, 3, 1, 48, 'relu', 5e-3),    # STT encoder-ish, B=2 grid steps
        (3, 16, 16, 5, 2, 40, 'tanh', 5e-3),    # dilated, B=3 grid steps
        (2, 32, 64, 1, 1, 33, 'linear', 5e-3),  # pointwise, padding=0, odd T
    ]
    for i, (B, C_in, C_out, K, dil, T, gain, atol) in enumerate(cases):
        key, pkey, xkey = jax.random.split(key, 3)
        conv = ConvNorm(pkey, C_in, C_out, kernel_size=K, stride=1, dilation=dil,
                        bias=True, w_init_gain=gain,
                        compute_dtype=jnp.bfloat16)
        signal = jax.random.normal(xkey, (B, C_in, T), jnp.float32)
        out = jax.block_until_ready(jax.jit(conv.__call__)(signal))
        ref = reference(conv, signal)
        assert out.shape == ref.shape, (i, out.shape, ref.shape)
        err = float(jnp.max(jnp.abs(out - ref)))
        assert err < atol, f"case {i}: max abs error {err}"
    print("KERNEL_OK")
</pallas_src>

<mosaic_0001>
module attributes {stable_mosaic.version = 11 : i64} {
  func.func @_conv1d_taps_kernel(%arg0: i32, %arg1: memref<1x80x50xbf16, #tpu.memory_space<vmem>>, %arg2: memref<3x32x80xbf16, #tpu.memory_space<vmem>>, %arg3: memref<32x1xf32, #tpu.memory_space<vmem>>, %arg4: memref<1x32x48xf32, #tpu.memory_space<vmem>>) attributes {dimension_semantics = [#tpu.dimension_semantics<parallel>], iteration_bounds = array<i64: 2>, scalar_prefetch = 0 : i64, scratch_operands = 0 : i64, tpu.core_type = #tpu.core_type<tc>, window_params = [{transform_indices = @transform_0, window_bounds = array<i64: 1, 80, 50>}, {pipeline_mode = #tpu.pipeline_mode<synchronous>, transform_indices = @transform_1, window_bounds = array<i64: 3, 32, 80>}, {pipeline_mode = #tpu.pipeline_mode<synchronous>, transform_indices = @transform_2, window_bounds = array<i64: 32, 1>}, {transform_indices = @transform_3, window_bounds = array<i64: 1, 32, 48>}]} {
    %cst = arith.constant 0.000000e+00 : f32
    %0 = vector.broadcast %cst : f32 to vector<32x48xf32>
    %c0 = arith.constant 0 : index
    %c0_0 = arith.constant 0 : index
    %c0_1 = arith.constant 0 : index
    %1 = vector.load %arg1[%c0, %c0_0, %c0_1] : memref<1x80x50xbf16, #tpu.memory_space<vmem>>, vector<1x80x48xbf16>
    %2 = vector.shape_cast %1 : vector<1x80x48xbf16> to vector<80x48xbf16>
    %c0_2 = arith.constant 0 : index
    %c0_3 = arith.constant 0 : index
    %c0_4 = arith.constant 0 : index
    %3 = vector.load %arg2[%c0_2, %c0_3, %c0_4] : memref<3x32x80xbf16, #tpu.memory_space<vmem>>, vector<1x32x80xbf16>
    %4 = vector.shape_cast %3 : vector<1x32x80xbf16> to vector<32x80xbf16>
    %cst_5 = arith.constant dense<0.000000e+00> : vector<32x48xf32>
    %5 = tpu.matmul %4, %2, %cst_5 {dimension_numbers = #tpu.dot_dimension_numbers<[1], [0], [0], [1], [0, 0, 1, 1], [], []>} : vector<32x80xbf16>, vector<80x48xbf16>, vector<32x48xf32> -> vector<32x48xf32>
    %6 = arith.addf %0, %5 : vector<32x48xf32>
    %c0_6 = arith.constant 0 : index
    %c0_7 = arith.constant 0 : index
    %c1 = arith.constant 1 : index
    %7 = vector.load %arg1[%c0_6, %c0_7, %c1] : memref<1x80x50xbf16, #tpu.memory_space<vmem>>, vector<1x80x48xbf16>
    %8 = vector.shape_cast %7 : vector<1x80x48xbf16> to vector<80x48xbf16>
    %c1_8 = arith.constant 1 : index
    %c0_9 = arith.constant 0 : index
    %c0_10 = arith.constant 0 : index
    %9 = vector.load %arg2[%c1_8, %c0_9, %c0_10] : memref<3x32x80xbf16, #tpu.memory_space<vmem>>, vector<1x32x80xbf16>
    %10 = vector.shape_cast %9 : vector<1x32x80xbf16> to vector<32x80xbf16>
    %cst_11 = arith.constant dense<0.000000e+00> : vector<32x48xf32>
    %11 = tpu.matmul %10, %8, %cst_11 {dimension_numbers = #tpu.dot_dimension_numbers<[1], [0], [0], [1], [0, 0, 1, 1], [], []>} : vector<32x80xbf16>, vector<80x48xbf16>, vector<32x48xf32> -> vector<32x48xf32>
    %12 = arith.addf %6, %11 : vector<32x48xf32>
    %c0_12 = arith.constant 0 : index
    %c0_13 = arith.constant 0 : index
    %c2 = arith.constant 2 : index
    %13 = vector.load %arg1[%c0_12, %c0_13, %c2] : memref<1x80x50xbf16, #tpu.memory_space<vmem>>, vector<1x80x48xbf16>
    %14 = vector.shape_cast %13 : vector<1x80x48xbf16> to vector<80x48xbf16>
    %c2_14 = arith.constant 2 : index
    %c0_15 = arith.constant 0 : index
    %c0_16 = arith.constant 0 : index
    %15 = vector.load %arg2[%c2_14, %c0_15, %c0_16] : memref<3x32x80xbf16, #tpu.memory_space<vmem>>, vector<1x32x80xbf16>
    %16 = vector.shape_cast %15 : vector<1x32x80xbf16> to vector<32x80xbf16>
    %cst_17 = arith.constant dense<0.000000e+00> : vector<32x48xf32>
    %17 = tpu.matmul %16, %14, %cst_17 {dimension_numbers = #tpu.dot_dimension_numbers<[1], [0], [0], [1], [0, 0, 1, 1], [], []>} : vector<32x80xbf16>, vector<80x48xbf16>, vector<32x48xf32> -> vector<32x48xf32>
    %18 = arith.addf %12, %17 : vector<32x48xf32>
    %c0_18 = arith.constant 0 : index
    %c0_19 = arith.constant 0 : index
    %19 = vector.load %arg3[%c0_18, %c0_19] : memref<32x1xf32, #tpu.memory_space<vmem>>, vector<32x1xf32>
    %20 = vector.broadcast %19 : vector<32x1xf32> to vector<32x48xf32>
    %21 = arith.addf %18, %20 : vector<32x48xf32>
    %c0_20 = arith.constant 0 : index
    %c0_21 = arith.constant 0 : index
    %c0_22 = arith.constant 0 : index
    %22 = vector.load %arg4[%c0_20, %c0_21, %c0_22] : memref<1x32x48xf32, #tpu.memory_space<vmem>>, vector<1x32x48xf32>
    %23 = vector.shape_cast %22 : vector<1x32x48xf32> to vector<32x48xf32>
    %24 = vector.shape_cast %21 : vector<32x48xf32> to vector<1x32x48xf32>
    tpu.vector_store %arg4[%c0_20, %c0_21, %c0_22], %24 {strides = array<i32>} : memref<1x32x48xf32, #tpu.memory_space<vmem>>, vector<1x32x48xf32>,
    return
  }
  func.func @transform_0(%arg0: i32) -> (i32, i32, i32) {
    %c0_i32 = arith.constant 0 : i32
    %c0_i32_0 = arith.constant 0 : i32
    %c0_i32_1 = arith.constant 0 : i32
    return %arg0, %c0_i32, %c0_i32_0 : i32, i32, i32
  }
  func.func @transform_1(%arg0: i32) -> (i32, i32, i32) {
    %c0_i32 = arith.constant 0 : i32
    %c0_i32_0 = arith.constant 0 : i32
    %c0_i32_1 = arith.constant 0 : i32
    %c0_i32_2 = arith.constant 0 : i32
    return %c0_i32, %c0_i32_0, %c0_i32_1 : i32, i32, i32
  }
  func.func @transform_2(%arg0: i32) -> (i32, i32) {
    %c0_i32 = arith.constant 0 : i32
    %c0_i32_0 = arith.constant 0 : i32
    %c0_i32_1 = arith.constant 0 : i32
    return %c0_i32, %c0_i32_0 : i32, i32
  }
  func.func @transform_3(%arg0: i32) -> (i32, i32, i32) {
    %c0_i32 = arith.constant 0 : i32
    %c0_i32_0 = arith.constant 0 : i32
    %c0_i32_1 = arith.constant 0 : i32
    return %arg0, %c0_i32, %c0_i32_0 : i32, i32, i32
  }
}

</mosaic_0001>

<llo_original>
// kernel: a_call__.1
$region0: #{a_call__.1}
  #allocation0 [shape = 'u32[]', space=smem, size = 0x4, offset = 0x4, fixed_abs, tag = 'smem constant byte address 0x4 - core index']
  #allocation1 [shape = 'u32[144,128]{1,0:T(1,128)}', space=vmem, size = 0x12000, scoped, tag = 'internal scratch']
  %s0 = inlined_call_operand.vmem [shape: bf16[2,80,50], index: 0, kind: input, shape index: {}]
  %s1 = inlined_call_operand.vmem [shape: bf16[3,32,80], index: 1, kind: input, shape index: {}]
  %s2 = inlined_call_operand.vmem [shape: f32[32,1], index: 2, kind: input, shape index: {}]
  %s3 = inlined_call_operand.hbm [shape: f32[2,32,48], index: 3, kind: output, shape index: {}]
  %s4 = sld [smem:[#allocation0]]
  $region45: #{a_call__.1} parent=0
    _
  %s6 = ssub.s32 1, %s4
  %s7 = scalar_select 0, %s6, %s4
  $region1: #{a_call__.1} parent=0
    #allocation2 [shape = 'u8[32768]{0}', space=vmem, size = 0x8000, scoped, tag = 'output window, operand 0']
    #allocation3 [shape = 's32[2]{0}', space=sflag, size = 0x8, scoped, tag = 'scoped memory for a_call__.1']
    %8 = vsyncpa [#allocation3], 0
    %s9 = scalar_lea.sflag [#allocation3], 1
    %10 = vsyncpa %s9, 0
    loop: start=0, step=1, limit=4
    $region2: #{a_call__.1} parent=1 // loop_pre_header
      _
    $region3: #{a_call__.1} parent=1 // loop_header
      %s12 = sphi 0, %s16
      %p13 = scmp.ge.s32.totalorder %s12, 4
      %s22 = sphi 0, %s24
      %s25 = sphi 0, %s22
      %s26 = sphi 0, %s25
      %s42 = sphi 0, %s26
      %s46 = sphi 0, %s46
      %s48 = sphi 0, %s46
      %s49 = sphi 0, %s48
      %s63 = sphi 0, %s49
      %s67 = sphi 0, %s67
      %s69 = sphi 0, %s67
      %s70 = sphi 0, %s69
      %s84 = sphi 0, %s70
      %s90 = sphi 0, %s92
      %s93 = sphi 0, %s90
      %s94 = sphi 0, %s93
      %s110 = sphi 0, %s94
    $region4: #{a_call__.1} parent=1 // loop_header_branch
      %15 = sbr.rel (%p13) target = $region8
    $region5: #{a_call__.1} parent=1 // loop_body
      %s17 = ssub.s32 %s12, 1
      %s18 = ssub.s32 %s12, 2
      %s19 = sadd.s32 %s12, 1
      %s20 = ssub.s32 %s12, %s19
      %p21 = scmp.eq.s32.totalorder %s20, 0
      %s23 = sadd.s32 %s22, 1
      %s24 = scalar_select %p21, %s22, %s23
      %p27 = pneg %p21
      %p28 = scmp.eq.s32.totalorder %s12, 1
      %p29 = por %p27, %p28
      %p30 = scmp.ne.s32.totalorder %s22, %s25
      %p31 = scmp.eq.s32.totalorder %s12, 0
      %p32 = por %p30, %p31
      %p33 = scmp.ne.s32.totalorder %s22, %s25
      %p34 = scmp.eq.s32.totalorder %s17, 1
      %p35 = por %p33, %p34
      %p36 = scmp.ne.s32.totalorder %s25, %s26
      %p37 = scmp.eq.s32.totalorder %s17, 0
      %p38 = por %p36, %p37
      %p39 = scmp.ne.s32.totalorder %s25, %s26
      %p40 = scmp.eq.s32.totalorder %s18, 1
      %p41 = por %p39, %p40
      %p43 = scmp.ne.s32.totalorder %s26, %s42
      %p44 = scmp.eq.s32.totalorder %s18, 0
      %p45 = por %p43, %p44
      %s47 = sadd.s32 %s46, 1
      %p50 = scmp.eq.s32.totalorder %s12, 1
      %p51 = scmp.ne.s32.totalorder %s46, %s48
      %p52 = scmp.eq.s32.totalorder %s12, 0
      %p53 = por %p51, %p52
      %p54 = scmp.ne.s32.totalorder %s46, %s48
      %p55 = scmp.eq.s32.totalorder %s17, 1
      %p56 = por %p54, %p55
      %p57 = scmp.ne.s32.totalorder %s48, %s49
      %p58 = scmp.eq.s32.totalorder %s17, 0
      %p59 = por %p57, %p58
      %p60 = scmp.ne.s32.totalorder %s48, %s49
      %p61 = scmp.eq.s32.totalorder %s18, 1
      %p62 = por %p60, %p61
      %p64 = scmp.ne.s32.totalorder %s49, %s63
      %p65 = scmp.eq.s32.totalorder %s18, 0
      %p66 = por %p64, %p65
      %s68 = sadd.s32 %s67, 1
      %p71 = scmp.eq.s32.totalorder %s12, 1
      %p72 = scmp.ne.s32.totalorder %s67, %s69
      %p73 = scmp.eq.s32.totalorder %s12, 0
      %p74 = por %p72, %p73
      %p75 = scmp.ne.s32.totalorder %s67, %s69
      %p76 = scmp.eq.s32.totalorder %s17, 1
      %p77 = por %p75, %p76
      %p78 = scmp.ne.s32.totalorder %s69, %s70
      %p79 = scmp.eq.s32.totalorder %s17, 0
      %p80 = por %p78, %p79
      %p81 = scmp.ne.s32.totalorder %s69, %s70
      %p82 = scmp.eq.s32.totalorder %s18, 1
      %p83 = por %p81, %p82
      %p85 = scmp.ne.s32.totalorder %s70, %s84
      %p86 = scmp.eq.s32.totalorder %s18, 0
      %p87 = por %p85, %p86
      %s88 = ssub.s32 %s12, %s19
      %p89 = scmp.eq.s32.totalorder %s88, 0
      %s91 = sadd.s32 %s90, 1
      %s92 = scalar_select %p89, %s90, %s91
      %p95 = pneg %p89
      %p96 = scmp.eq.s32.totalorder %s12, 1
      %p97 = por %p95, %p96
      %p98 = scmp.ne.s32.totalorder %s90, %s93
      %p99 = scmp.eq.s32.totalorder %s12, 0
      %p100 = por %p98, %p99
      %p101 = scmp.ne.s32.totalorder %s90, %s93
      %p102 = scmp.eq.s32.totalorder %s17, 1
      %p103 = por %p101, %p102
      %p104 = scmp.ne.s32.totalorder %s93, %s94
      %p105 = scmp.eq.s32.totalorder %s17, 0
      %p106 = por %p104, %p105
      %p107 = scmp.ne.s32.totalorder %s93, %s94
      %p108 = scmp.eq.s32.totalorder %s18, 1
      %p109 = por %p107, %p108
      %p111 = scmp.ne.s32.totalorder %s94, %s110
      %p112 = scmp.eq.s32.totalorder %s18, 0
      %p113 = por %p111, %p112
      %p114 = scmp.le.s32.totalorder 1, %s12
      %p115 = scmp.lt.s32.totalorder %s12, 3
      %p116 = pnand %p114, %p115
      %p117 = pneg %p116
      // Predicated region
      $region9: #{a_call__.1} parent=5 // pred_check
        _
      $region10: #{a_call__.1} parent=5 // pred_check_branch
        %119 = sbr.rel (%p116) target = $region12
      $region11: #{a_call__.1} parent=5 // pred_region
        %s120 = ssub.s32 %s12, 1
        // Predicated region
        $region13: #{a_call__.1} parent=11 // pred_check
          %p121 = pneg %p59
        $region14: #{a_call__.1} parent=11 // pred_check_branch
          %123 = sbr.rel (%p121) target = $region16
        $region15: #{a_call__.1} parent=11 // pred_region
          _
        $region16: #{a_call__.1} parent=11 // pred_fallthru
          _
        // Predicated region
        $region17: #{a_call__.1} parent=11 // pred_check
          %p124 = pneg %p80
        $region18: #{a_call__.1} parent=11 // pred_check_branch
          %126 = sbr.rel (%p124) target = $region20
        $region19: #{a_call__.1} parent=11 // pred_region
          _
        $region20: #{a_call__.1} parent=11 // pred_fallthru
          _
      $region12: #{a_call__.1} parent=5 // pred_fallthru
        _
      %p127 = scmp.lt.s32.totalorder %s12, 2
      // Predicated region
      $region21: #{a_call__.1} parent=5 // pred_check
        %p128 = pneg %p127
      $region22: #{a_call__.1} parent=5 // pred_check_branch
        %130 = sbr.rel (%p128) target = $region24
      $region23: #{a_call__.1} parent=5 // pred_region
        // Predicated region
        $region25: #{a_call__.1} parent=23 // pred_check
          %p131 = pneg %p32
        $region26: #{a_call__.1} parent=23 // pred_check_branch
          %133 = sbr.rel (%p131) target = $region28
        $region27: #{a_call__.1} parent=23 // pred_region
          %p134 = scmp.lt.s32.totalorder %s12, 1
          %s135 = scalar_select %p134, %s12, 1
          %s136 = smul.addr %s135, 10
          %s137 = smul.addr %s136, 4
          %s138 = scalar_lea.vmem %s0, %s137
        $region28: #{a_call__.1} parent=23 // pred_fallthru
          _
      $region24: #{a_call__.1} parent=5 // pred_fallthru
        _
      %p139 = scmp.le.s32.totalorder 1, %s12
      %p140 = scmp.lt.s32.totalorder %s12, 3
      %p141 = pnand %p139, %p140
      %p142 = pneg %p141
      // Predicated region
      $region29: #{a_call__.1} parent=5 // pred_check
        _
      $region30: #{a_call__.1} parent=5 // pred_check_branch
        %144 = sbr.rel (%p141) target = $region32
      $region31: #{a_call__.1} parent=5 // pred_region
        %s145 = ssub.s32 %s12, 1
        %p146 = scmp.lt.s32.totalorder %s17, 1
        %s147 = scalar_select %p146, %s17, 1
        %s148 = smul.addr %s147, 10
        %s149 = smul.addr %s148, 4
        %s150 = scalar_lea.vmem %s0, %s149
        %p151 = pneg %p38
        %p152 = pneg %p35
        %p153 = pneg %p59
        %p154 = pneg %p56
        %p155 = pneg %p80
        %p156 = pneg %p77
        %p157 = pneg %p106
        %p158 = pneg %p103
        %s159 = sand.u32 %s93, 1
        %s160 = scalar_lea.sflag [#allocation3], %s159
        %s161 = sand.u32 %s93, 1
        %s162 = smul.addr %s161, 32
        %s163 = scalar_lea.vmem [#allocation2], %s162
        %p164 = scmp.lt.s32.totalorder %s17, 1
        %s165 = scalar_select %p164, %s17, 1
        %s166 = smul.addr %s165, 10
        %s167 = smul.addr %s166, 4
        %s168 = scalar_lea.vmem %s0, %s167
        %v170 = vld [vmem:[%s168] sm:$0xf]
        %v171 = vld [vmem:[%s168 + $0x4] sm:$0xf]
        %v172 = vld [vmem:[%s168 + $0x8] sm:$0xf]
        %v173 = vld [vmem:[%s168 + $0xc] sm:$0xf]
        %v174 = vld [vmem:[%s168 + $0x10] sm:$0xf]
        %v175 = vld [vmem:[%s168 + $0x14] sm:$0xf]
        %v176 = vld [vmem:[%s168 + $0x18] sm:$0xf]
        %v177 = vld [vmem:[%s168 + $0x1c] sm:$0xf]
        %v178 = vld [vmem:[%s168 + $0x20] sm:$0xf]
        %v179 = vld [vmem:[%s168 + $0x24] sm:$0xf]
        %v180 = vld [vmem:[%s1] sm:$0xf]
        %v181 = vld [vmem:[%s1 + $0x4] sm:$0xf]
        %v182 = vld [vmem:[%s1 + $0x8] sm:$0xf]
        %v183 = vld [vmem:[%s1 + $0xc] sm:$0xf]
        %s184 = scalar_lea.vmem %s1, 16
        %v185 = vld [vmem:[%s184] sm:$0xf]
        %v186 = vld [vmem:[%s184 + $0x4] sm:$0xf]
        %v187 = vld [vmem:[%s184 + $0x8] sm:$0xf]
        %v188 = vld [vmem:[%s184 + $0xc] sm:$0xf]
        %v193 = vunpack.c.l.b16 %v185
        %v194 = vunpack.c.l.b16 %v186
        %v195 = vunpack.c.l.b16 %v187
        %v196 = vunpack.c.l.b16 %v188
        %v197 = vpack.c.b16 %v194, %v193
        %v198 = vpack.c.b16 %v196, %v195
        %v209 = vunpack.c.l.b16 %v170
        %v210 = vunpack.c.l.b16 %v171
        %v211 = vunpack.c.l.b16 %v172
        %v212 = vunpack.c.l.b16 %v173
        %v213 = vunpack.c.l.b16 %v174
        %v214 = vunpack.c.l.b16 %v175
        %v215 = vunpack.c.l.b16 %v176
        %v216 = vunpack.c.l.b16 %v177
        %v217 = vunpack.c.l.b16 %v178
        %v218 = vunpack.c.l.b16 %v179
        %v219 = vpack.c.b16 %v210, %v209
        %v220 = vpack.c.b16 %v212, %v211
        %v221 = vpack.c.b16 %v214, %v213
        %v222 = vpack.c.b16 %v216, %v215
        %v223 = vpack.c.b16 %v218, %v217
        %224 = vrot.lane.b32.xlu0 %v219, 127
        %v225 = vpop.permute.xlu0 %224
        %226 = vrot.lane.b32.xlu0 %v220, 127
        %v227 = vpop.permute.xlu0 %226
        %228 = vrot.lane.b32.xlu0 %v221, 127
        %v229 = vpop.permute.xlu0 %228
        %230 = vrot.lane.b32.xlu0 %v222, 127
        %v231 = vpop.permute.xlu0 %230
        %232 = vrot.lane.b32.xlu0 %v223, 127
        %v233 = vpop.permute.xlu0 %232
        %vm239 = vcmask 654336
        %v241 = vsel %vm239, %v197, 0
        %v244 = vsel %vm239, %v198, 0
        %246 = vmatprep.subr.bf16.mxu0 0
        %247 = vmatpush1.bf16.msra.mxu0 0
        %248 = vmatprep.subr.bf16.mxu0 0
        %249 = vmatpush1.bf16.msra.mxu0 0
        %250 = vmatprep.subr.bf16.mxu0 0
        %251 = vmatpush1.bf16.msra.mxu0 0
        %252 = vmatprep.subr.bf16.mxu0 0
        %253 = vmatpush1.bf16.msra.mxu0 %v233
        %254 = vmatprep.subr.bf16.mxu0 0
        %255 = vmatpush1.bf16.msra.mxu0 %v231
        %256 = vmatprep.subr.bf16.mxu0 0
        %257 = vmatpush1.bf16.msra.mxu0 %v229
        %258 = vmatprep.subr.bf16.mxu0 0
        %259 = vmatpush1.bf16.msra.mxu0 %v227
        %260 = vmatprep.subr.bf16.mxu0 0
        %261 = vmatpush1.bf16.msra.mxu0 %v225
        %262 = vmatprep.subr.bf16.mxu0 0
        %263 = vmatpush2.bf16.msra.mxu0 0
        %264 = vmatprep.subr.bf16.mxu0 0
        %265 = vmatpush2.bf16.msra.mxu0 0
        %266 = vmatprep.subr.bf16.mxu0 0
        %267 = vmatpush2.bf16.msra.mxu0 0
        %268 = vmatprep.subr.bf16.mxu0 0
        %269 = vmatpush2.bf16.msra.mxu0 0
        %270 = vmatprep.subr.bf16.mxu0 0
        %271 = vmatpush2.bf16.msra.mxu0 0
        %272 = vmatprep.subr.bf16.mxu0 0
        %273 = vmatpush2.bf16.msra.mxu0 0
        %274 = vmatprep.subr.bf16.mxu0 0
        %275 = vmatpush2.bf16.msra.mxu0 0
        %276 = vmatprep.subr.bf16.mxu0 0
        %277 = vmatpush2.bf16.msra.mxu0 0
        %278 = vmatprep.mubr.bf16.mxu0 0
        %279 = vmatmul.mubr.bf16.gmra.mxu0 %v241
        %v280 = vpop.f32.mrf.mxu0
        %v281 = vadd.f32 0.0, %v280
        %v282 = vpop.f32.mrf.mxu0
        %v283 = vpop.f32.mrf.mxu0
        %v284 = vadd.f32 0.0, %v283
        %v285 = vpop.f32.mrf.mxu0
        %286 = vmatprep.mubr.bf16.mxu0 0
        %287 = vmatmul.mubr.bf16.gmra.mxu0 %v244
        %v288 = vpop.f32.mrf.mxu0
        %v289 = vadd.f32 0.0, %v288
        %v290 = vpop.f32.mrf.mxu0
        %v291 = vpop.f32.mrf.mxu0
        %v292 = vadd.f32 0.0, %v291
        %v293 = vpop.f32.mrf.mxu0
        %294 = vdwg.mxu0
        %v299 = vunpack.c.l.b16 %v180
        %v300 = vunpack.c.l.b16 %v181
        %v301 = vunpack.c.l.b16 %v182
        %v302 = vunpack.c.l.b16 %v183
        %v303 = vpack.c.b16 %v300, %v299
        %v304 = vpack.c.b16 %v302, %v301
        %v311 = vsel %vm239, %v303, 0
        %v314 = vsel %vm239, %v304, 0
        %316 = vmatprep.subr.bf16.mxu0 0
        %317 = vmatpush1.bf16.msra.mxu0 0
        %318 = vmatprep.subr.bf16.mxu0 0
        %319 = vmatpush1.bf16.msra.mxu0 0
        %320 = vmatprep.subr.bf16.mxu0 0
        %321 = vmatpush1.bf16.msra.mxu0 0
        %322 = vmatprep.subr.bf16.mxu0 0
        %323 = vmatpush1.bf16.msra.mxu0 %v223
        %324 = vmatprep.subr.bf16.mxu0 0
        %325 = vmatpush1.bf16.msra.mxu0 %v222
        %326 = vmatprep.subr.bf16.mxu0 0
        %327 = vmatpush1.bf16.msra.mxu0 %v221
        %328 = vmatprep.subr.bf16.mxu0 0
        %329 = vmatpush1.bf16.msra.mxu0 %v220
        %330 = vmatprep.subr.bf16.mxu0 0
        %331 = vmatpush1.bf16.msra.mxu0 %v219
        %332 = vmatprep.subr.bf16.mxu0 0
        %333 = vmatpush2.bf16.msra.mxu0 0
        %334 = vmatprep.subr.bf16.mxu0 0
        %335 = vmatpush2.bf16.msra.mxu0 0
        %336 = vmatprep.subr.bf16.mxu0 0
        %337 = vmatpush2.bf16.msra.mxu0 0
        %338 = vmatprep.subr.bf16.mxu0 0
        %339 = vmatpush2.bf16.msra.mxu0 0
        %340 = vmatprep.subr.bf16.mxu0 0
        %341 = vmatpush2.bf16.msra.mxu0 0
        %342 = vmatprep.subr.bf16.mxu0 0
        %343 = vmatpush2.bf16.msra.mxu0 0
        %344 = vmatprep.subr.bf16.mxu0 0
        %345 = vmatpush2.bf16.msra.mxu0 0
        %346 = vmatprep.subr.bf16.mxu0 0
        %347 = vmatpush2.bf16.msra.mxu0 0
        %348 = vmatprep.mubr.bf16.mxu0 0
        %349 = vmatmul.mubr.bf16.gmra.mxu0 %v311
        %v350 = vpop.f32.mrf.mxu0
        %v351 = vadd.f32 %v281, %v350
        %v352 = vpop.f32.mrf.mxu0
        %v353 = vpop.f32.mrf.mxu0
        %v354 = vadd.f32 %v284, %v353
        %v355 = vpop.f32.mrf.mxu0
        %356 = vmatprep.mubr.bf16.mxu0 0
        %357 = vmatmul.mubr.bf16.gmra.mxu0 %v314
        %v358 = vpop.f32.mrf.mxu0
        %v359 = vadd.f32 %v289, %v358
        %v360 = vpop.f32.mrf.mxu0
        %v361 = vpop.f32.mrf.mxu0
        %v362 = vadd.f32 %v292, %v361
        %v363 = vpop.f32.mrf.mxu0
        %364 = vdwg.mxu0
        %s365 = scalar_lea.vmem %s1, 32
        %v366 = vld [vmem:[%s365] sm:$0xf]
        %v367 = vld [vmem:[%s365 + $0x4] sm:$0xf]
        %v368 = vld [vmem:[%s365 + $0x8] sm:$0xf]
        %v369 = vld [vmem:[%s365 + $0xc] sm:$0xf]
        %v374 = vunpack.c.l.b16 %v366
        %v375 = vunpack.c.l.b16 %v367
        %v376 = vunpack.c.l.b16 %v368
        %v377 = vunpack.c.l.b16 %v369
        %v378 = vpack.c.b16 %v375, %v374
        %v379 = vpack.c.b16 %v377, %v376
        %380 = vrot.lane.b32.xlu0 %v219, 126
        %v381 = vpop.permute.xlu0 %380
        %382 = vrot.lane.b32.xlu0 %v220, 126
        %v383 = vpop.permute.xlu0 %382
        %384 = vrot.lane.b32.xlu0 %v221, 126
        %v385 = vpop.permute.xlu0 %384
        %386 = vrot.lane.b32.xlu0 %v222, 126
        %v387 = vpop.permute.xlu0 %386
        %388 = vrot.lane.b32.xlu0 %v223, 126
        %v389 = vpop.permute.xlu0 %388
        %v396 = vsel %vm239, %v378, 0
        %v399 = vsel %vm239, %v379, 0
        %401 = vmatprep.subr.bf16.mxu0 0
        %402 = vmatpush1.bf16.msra.mxu0 0
        %403 = vmatprep.subr.bf16.mxu0 0
        %404 = vmatpush1.bf16.msra.mxu0 0
        %405 = vmatprep.subr.bf16.mxu0 0
        %406 = vmatpush1.bf16.msra.mxu0 0
        %407 = vmatprep.subr.bf16.mxu0 0
        %408 = vmatpush1.bf16.msra.mxu0 %v389
        %409 = vmatprep.subr.bf16.mxu0 0
        %410 = vmatpush1.bf16.msra.mxu0 %v387
        %411 = vmatprep.subr.bf16.mxu0 0
        %412 = vmatpush1.bf16.msra.mxu0 %v385
        %413 = vmatprep.subr.bf16.mxu0 0
        %414 = vmatpush1.bf16.msra.mxu0 %v383
        %415 = vmatprep.subr.bf16.mxu0 0
        %416 = vmatpush1.bf16.msra.mxu0 %v381
        %417 = vmatprep.subr.bf16.mxu0 0
        %418 = vmatpush2.bf16.msra.mxu0 0
        %419 = vmatprep.subr.bf16.mxu0 0
        %420 = vmatpush2.bf16.msra.mxu0 0
        %421 = vmatprep.subr.bf16.mxu0 0
        %422 = vmatpush2.bf16.msra.mxu0 0
        %423 = vmatprep.subr.bf16.mxu0 0
        %424 = vmatpush2.bf16.msra.mxu0 0
        %425 = vmatprep.subr.bf16.mxu0 0
        %426 = vmatpush2.bf16.msra.mxu0 0
        %427 = vmatprep.subr.bf16.mxu0 0
        %428 = vmatpush2.bf16.msra.mxu0 0
        %429 = vmatprep.subr.bf16.mxu0 0
        %430 = vmatpush2.bf16.msra.mxu0 0
        %431 = vmatprep.subr.bf16.mxu0 0
        %432 = vmatpush2.bf16.msra.mxu0 0
        %433 = vmatprep.mubr.bf16.mxu0 0
        %434 = vmatmul.mubr.bf16.gmra.mxu0 %v396
        %v435 = vpop.f32.mrf.mxu0
        %v436 = vadd.f32 0.0, %v435
        %v437 = vpop.f32.mrf.mxu0
        %v438 = vpop.f32.mrf.mxu0
        %v439 = vadd.f32 0.0, %v438
        %v440 = vpop.f32.mrf.mxu0
        %441 = vmatprep.mubr.bf16.mxu0 0
        %442 = vmatmul.mubr.bf16.gmra.mxu0 %v399
        %v443 = vpop.f32.mrf.mxu0
        %v444 = vadd.f32 0.0, %v443
        %v445 = vpop.f32.mrf.mxu0
        %v446 = vpop.f32.mrf.mxu0
        %v447 = vadd.f32 0.0, %v446
        %v448 = vpop.f32.mrf.mxu0
        %449 = vdwg.mxu0
        %v450 = vadd.f32 %v351, %v436
        %v451 = vadd.f32 %v354, %v439
        %v452 = vadd.f32 %v359, %v444
        %v453 = vadd.f32 %v362, %v447
        %v454 = vld [vmem:[%s2] sm:$0xff]
        %v455 = vld [vmem:[%s2 + $0x8] sm:$0xff]
        %v456 = vld [vmem:[%s2 + $0x10] sm:$0xff]
        %v457 = vld [vmem:[%s2 + $0x18] sm:$0xff]
        %459 = vset.pattern.permute.xlu0 0
        %460 = vperm.xlu0 %459, %v454
        %v461 = vpop.permute.xlu0 %460
        %464 = vset.pattern.permute.xlu0 0
        %465 = vperm.xlu0 %464, %v455
        %v466 = vpop.permute.xlu0 %465
        %469 = vset.pattern.permute.xlu0 0
        %470 = vperm.xlu0 %469, %v456
        %v471 = vpop.permute.xlu0 %470
        %474 = vset.pattern.permute.xlu0 0
        %475 = vperm.xlu0 %474, %v457
        %v476 = vpop.permute.xlu0 %475
        %v478 = vadd.f32 %v450, %v461
        %v479 = vadd.f32 %v451, %v466
        %v480 = vadd.f32 %v452, %v471
        %v481 = vadd.f32 %v453, %v476
        %vm482 = vcmask 392192
        %483 = vst.msk [vmem:[%s163] sm:$0xff] %vm482, %v478
        %484 = vst.msk [vmem:[%s163 + $0x8] sm:$0xff] %vm482, %v479
        %485 = vst.msk [vmem:[%s163 + $0x10] sm:$0xff] %vm482, %v480
        %486 = vst.msk [vmem:[%s163 + $0x18] sm:$0xff] %vm482, %v481
        %s487 = sand.u32 %s93, 1
        %s488 = scalar_lea.sflag [#allocation3], %s487
        %s489 = sand.u32 %s93, 1
        %s490 = smul.addr %s489, 32
        %s491 = scalar_lea.vmem [#allocation2], %s490
        // Predicated region
        $region33: #{a_call__.1} parent=31 // pred_check
          %p492 = pneg %p103
        $region34: #{a_call__.1} parent=31 // pred_check_branch
          %494 = sbr.rel (%p492) target = $region36
        $region35: #{a_call__.1} parent=31 // pred_region
          %s496 = ssub.s32 512, 512
          %497 = vsyncadd %s488, %s496
          %s498 = smul.addr %s17, 4
          %s499 = smul.addr %s498, 128
          %s500 = scalar_lea.hbm %s3, %s499
          %s501 = sshll.u32 %s491, 4
          %s502 = int_to_ptr.vmem [resolvable:$true] %s501
          %507 = dma.vmem_to_hbm [thread:$0]  %s502, 512, %s500, %s488, 128, 128, 8
        $region36: #{a_call__.1} parent=31 // pred_fallthru
          _
      $region32: #{a_call__.1} parent=5 // pred_fallthru
        _
      %p508 = scmp.le.s32.totalorder 2, %s12
      // Predicated region
      $region37: #{a_call__.1} parent=5 // pred_check
        %p509 = pneg %p508
      $region38: #{a_call__.1} parent=5 // pred_check_branch
        %511 = sbr.rel (%p509) target = $region40
      $region39: #{a_call__.1} parent=5 // pred_region
        %s512 = ssub.s32 %s12, 2
        // Predicated region
        $region41: #{a_call__.1} parent=39 // pred_check
          %p513 = pneg %p109
        $region42: #{a_call__.1} parent=39 // pred_check_branch
          %515 = sbr.rel (%p513) target = $region44
        $region43: #{a_call__.1} parent=39 // pred_region
          %s516 = sand.u32 %s94, 1
          %s517 = scalar_lea.sflag [#allocation3], %s516
          %s518 = sand.u32 %s94, 1
          %s519 = smul.addr %s518, 32
          %s520 = scalar_lea.vmem [#allocation2], %s519
          %521 = dma.done %s517, 512
        $region44: #{a_call__.1} parent=39 // pred_fallthru
          _
      $region40: #{a_call__.1} parent=5 // pred_fallthru
        _
    $region6: #{a_call__.1} parent=1 // loop_footer
      %s16 = sadd.s32 1, %s12
    $region7: #{a_call__.1} parent=1 // loop_footer_branch
      %11 = sbr.rel target = $region3
    $region8: #{a_call__.1} parent=1 // loop_exit
      _
    %522 = vsyncpa [#allocation3], 1
    %s523 = scalar_lea.sflag [#allocation3], 1
    %524 = vsyncpa %s523, 1

</llo_original>
